<compile_context>
chip_gen: v7x
topology: tpu7x:2x2x1
jax: 0.10.0
libtpu: 0.0.40
codegen_flags: <defaults>
</compile_context>

<pallas_src>
import math
from functools import partial

import jax
import jax.numpy as jnp
from jax.experimental import pallas as pl
from jax.experimental.pallas import tpu as pltpu


# ---------------------------------------------------------------------------
# Fused Pallas kernel: 3 GEMMs + tanh + bias epilogues for one batch tile.
# ---------------------------------------------------------------------------
def _mean_mlp_kernel(x_ref, w1_ref, b1_ref, w2_ref, b2_ref, wo_ref, bo_ref,
                     mean_ref):
    cd = w1_ref.dtype                      # compute dtype for MXU operands
    x = x_ref[...]
    h = jnp.tanh(
        jnp.dot(x, w1_ref[...], preferred_element_type=jnp.float32)
        + b1_ref[...])
    h = jnp.tanh(
        jnp.dot(h.astype(cd), w2_ref[...], preferred_element_type=jnp.float32)
        + b2_ref[...])
    mean = (jnp.dot(h.astype(cd), wo_ref[...],
                    preferred_element_type=jnp.float32)
            + bo_ref[...])
    mean_ref[...] = mean.astype(mean_ref.dtype)


def _round_up(n, m):
    return ((n + m - 1) // m) * m


def _const_spec(shape):
    nd = len(shape)
    return pl.BlockSpec(shape, lambda i, _nd=nd: (0,) * _nd)


# ---------------------------------------------------------------------------
# Wrapper: batch-tiled pallas_call for the mean head + tiny std head in JAX.
# ---------------------------------------------------------------------------
def gaussian_mlp_forward(x, params, *, min_std=1e-6, max_std=None,
                         block_rows=512, io_dtype=jnp.float32):
    """Pallas-backed GaussianMLPBaseModule.forward -> (mean, std).

    mean : (B, output_dim) f32
    std  : (output_dim,)   f32   (batch-independent; Normal broadcasts it)
    """
    io_dtype = jnp.dtype(io_dtype)
    B, din = x.shape
    w1, b1 = params["w1"], params["b1"]
    w2, b2 = params["w2"], params["b2"]
    wo, bo = params["wo"], params["bo"]
    h1, h2, dout = w1.shape[1], w2.shape[1], wo.shape[1]

    # --- HBM-facing dtype narrowing (v6e/v7x: bf16 halves the x/weight read) --
    if io_dtype != jnp.dtype(jnp.float32):
        x = x.astype(io_dtype)
        w1 = w1.astype(io_dtype)
        w2 = w2.astype(io_dtype)
        wo = wo.astype(io_dtype)

    # Biases stay f32 (added to f32 accumulators), shaped as (1, N) rows.
    b1r = b1.reshape(1, h1).astype(jnp.float32)
    b2r = b2.reshape(1, h2).astype(jnp.float32)
    bor = bo.reshape(1, dout).astype(jnp.float32)

    # --- batch tiling: tile_b multiple of 16 (safe for f32 and bf16 layouts) --
    tile_b = min(block_rows, _round_up(B, 16))
    tile_b = _round_up(tile_b, 16)
    b_pad = _round_up(B, tile_b)
    if b_pad != B:
        x = jnp.pad(x, ((0, b_pad - B), (0, 0)))
    grid = (pl.cdiv(b_pad, tile_b),)

    # --- cost hint for XLA scheduling around the custom call ----------------
    flops = 2 * b_pad * (din * h1 + h1 * h2 + h2 * dout)
    transcendentals = b_pad * (h1 + h2)
    param_bytes = ((w1.size + w2.size + wo.size) * w1.dtype.itemsize
                   + (b1r.size + b2r.size + bor.size) * 4)
    bytes_accessed = (b_pad * (din * x.dtype.itemsize + dout * 4)
                      + param_bytes)

    mean_padded = pl.pallas_call(
        _mean_mlp_kernel,
        out_shape=jax.ShapeDtypeStruct((b_pad, dout), jnp.float32),
        grid=grid,
        in_specs=[
            pl.BlockSpec((tile_b, din), lambda i: (i, 0)),   # streamed x tile
            _const_spec(w1.shape), _const_spec(b1r.shape),   # resident params
            _const_spec(w2.shape), _const_spec(b2r.shape),
            _const_spec(wo.shape), _const_spec(bor.shape),
        ],
        out_specs=pl.BlockSpec((tile_b, dout), lambda i: (i, 0)),
        compiler_params=pltpu.CompilerParams(
            dimension_semantics=("parallel",),        # megacore on v7x
            vmem_limit_bytes=32 * 1024 * 1024,        # explicit, with headroom
        ),
        cost_estimate=pl.CostEstimate(
            flops=flops,
            transcendentals=transcendentals,
            bytes_accessed=bytes_accessed,
        ),
    )(x, w1, b1r, w2, b2r, wo, bor)

    mean = mean_padded[:B]

    # --- std head: batch-independent 8-element clamp + exp (no HBM broadcast)
    log_std = params["log_std"].astype(jnp.float32)
    if min_std is not None:
        log_std = jnp.maximum(log_std, math.log(min_std))
    if max_std is not None:
        log_std = jnp.minimum(log_std, math.log(max_std))
    std = jnp.exp(log_std)
    # TODO(synk): torch's forward returns Independent(Normal(mean, std), 1);
    # a distribution object has no Pallas equivalent, so we return (mean, std).
    return mean, std


# ---------------------------------------------------------------------------
# Pure-JAX reference (correctness check only).
# ---------------------------------------------------------------------------
def reference_forward(x, params, *, min_std=1e-6, max_std=None):
    h = jnp.tanh(x @ params["w1"] + params["b1"])
    h = jnp.tanh(h @ params["w2"] + params["b2"])
    mean = h @ params["wo"] + params["bo"]
    log_std = params["log_std"]
    if min_std is not None:
        log_std = jnp.maximum(log_std, math.log(min_std))
    if max_std is not None:
        log_std = jnp.minimum(log_std, math.log(max_std))
    std = jnp.exp(log_std)
    return mean, std


# ---------------------------------------------------------------------------
# Deterministic parameter init (xavier_uniform weights, zero biases,
# log_std = log(init_std=1.0) = 0).  Weights stored (in, out): PyTorch's
# Linear (out, in) layout is folded into the parameters offline.
# ---------------------------------------------------------------------------
def xavier_uniform(key, fan_in, fan_out):
    bound = math.sqrt(6.0 / (fan_in + fan_out))
    return jax.random.uniform(key, (fan_in, fan_out), jnp.float32, -bound, bound)


def make_params(key, input_dim=16, hidden_sizes=(32, 32), output_dim=8,
                init_std=1.0):
    k1, k2, k3 = jax.random.split(key, 3)
    h1, h2 = hidden_sizes
    return {
        "w1": xavier_uniform(k1, input_dim, h1),
        "b1": jnp.zeros((h1,), jnp.float32),
        "w2": xavier_uniform(k2, h1, h2),
        "b2": jnp.zeros((h2,), jnp.float32),
        "wo": xavier_uniform(k3, h2, output_dim),
        "bo": jnp.zeros((output_dim,), jnp.float32),
        "log_std": jnp.full((output_dim,), math.log(init_std), jnp.float32),
    }


if __name__ == "__main__":
    key = jax.random.PRNGKey(0)
    k_x, k_p, k_big = jax.random.split(key, 3)

    batch, input_dim, output_dim = 2, 16, 8
    x = jax.random.normal(k_x, (batch, input_dim), jnp.float32)
    params = make_params(k_p, input_dim=input_dim, output_dim=output_dim)

    fwd = jax.jit(partial(gaussian_mlp_forward, min_std=1e-6, max_std=None))

    # ---- tiny-batch f32 path (matches torch f32 semantics) -----------------
    mean, std = fwd(x, params)
    jax.block_until_ready((mean, std))
    mean_ref, std_ref = reference_forward(x, params)
    assert mean.shape == (batch, output_dim), mean.shape
    assert std.shape == (output_dim,), std.shape
    assert jnp.allclose(mean, mean_ref, atol=1e-5, rtol=1e-5), \
        float(jnp.max(jnp.abs(mean - mean_ref)))
    assert jnp.allclose(std, std_ref, atol=1e-6, rtol=1e-6)
    assert bool(jnp.all(std > 0.0))

    # ---- larger, non-tile-multiple batch exercises tiling/padding/pipelining
    xb = jax.random.normal(k_big, (1000, input_dim), jnp.float32)
    mean_b, std_b = fwd(xb, params)
    jax.block_until_ready((mean_b, std_b))
    mean_b_ref, _ = reference_forward(xb, params)
    assert mean_b.shape == (1000, output_dim)
    assert jnp.allclose(mean_b, mean_b_ref, atol=1e-5, rtol=1e-5), \
        float(jnp.max(jnp.abs(mean_b - mean_b_ref)))

    # ---- bf16 HBM I/O variant (v6e/v7x perf path), f32 accumulation --------
    fwd_bf16 = jax.jit(partial(gaussian_mlp_forward, min_std=1e-6,
                               max_std=None, io_dtype=jnp.bfloat16))
    mean_h, std_h = fwd_bf16(xb, params)
    jax.block_until_ready((mean_h, std_h))
    assert mean_h.shape == (1000, output_dim)
    assert jnp.allclose(mean_h, mean_b_ref, atol=5e-2, rtol=5e-2), \
        float(jnp.max(jnp.abs(mean_h - mean_b_ref)))
    assert bool(jnp.all(std_h > 0.0))

    print("KERNEL_OK")
</pallas_src>

<mosaic_0001>
module attributes {stable_mosaic.version = 11 : i64} {
  func.func @_mean_mlp_kernel(%arg0: i32, %arg1: memref<16x16xf32, #tpu.memory_space<vmem>>, %arg2: memref<16x32xf32, #tpu.memory_space<vmem>>, %arg3: memref<1x32xf32, #tpu.memory_space<vmem>>, %arg4: memref<32x32xf32, #tpu.memory_space<vmem>>, %arg5: memref<1x32xf32, #tpu.memory_space<vmem>>, %arg6: memref<32x8xf32, #tpu.memory_space<vmem>>, %arg7: memref<1x8xf32, #tpu.memory_space<vmem>>, %arg8: memref<16x8xf32, #tpu.memory_space<vmem>>) attributes {dimension_semantics = [#tpu.dimension_semantics<parallel>], iteration_bounds = array<i64: 1>, scalar_prefetch = 0 : i64, scratch_operands = 0 : i64, tpu.core_type = #tpu.core_type<tc>, window_params = [{transform_indices = @transform_0, window_bounds = array<i64: 16, 16>}, {pipeline_mode = #tpu.pipeline_mode<synchronous>, transform_indices = @transform_1, window_bounds = array<i64: 16, 32>}, {pipeline_mode = #tpu.pipeline_mode<synchronous>, transform_indices = @transform_2, window_bounds = array<i64: 1, 32>}, {pipeline_mode = #tpu.pipeline_mode<synchronous>, transform_indices = @transform_3, window_bounds = array<i64: 32, 32>}, {pipeline_mode = #tpu.pipeline_mode<synchronous>, transform_indices = @transform_4, window_bounds = array<i64: 1, 32>}, {pipeline_mode = #tpu.pipeline_mode<synchronous>, transform_indices = @transform_5, window_bounds = array<i64: 32, 8>}, {pipeline_mode = #tpu.pipeline_mode<synchronous>, transform_indices = @transform_6, window_bounds = array<i64: 1, 8>}, {transform_indices = @transform_7, window_bounds = array<i64: 16, 8>}]} {
    %c0 = arith.constant 0 : index
    %c0_0 = arith.constant 0 : index
    %0 = vector.load %arg1[%c0, %c0_0] : memref<16x16xf32, #tpu.memory_space<vmem>>, vector<16x16xf32>
    %c0_1 = arith.constant 0 : index
    %c0_2 = arith.constant 0 : index
    %1 = vector.load %arg2[%c0_1, %c0_2] : memref<16x32xf32, #tpu.memory_space<vmem>>, vector<16x32xf32>
    %cst = arith.constant dense<0.000000e+00> : vector<16x32xf32>
    %2 = tpu.matmul %0, %1, %cst {dimension_numbers = #tpu.dot_dimension_numbers<[1], [0], [0], [1], [0, 0, 1, 1], [], []>} : vector<16x16xf32>, vector<16x32xf32>, vector<16x32xf32> -> vector<16x32xf32>
    %c0_3 = arith.constant 0 : index
    %c0_4 = arith.constant 0 : index
    %3 = vector.load %arg3[%c0_3, %c0_4] : memref<1x32xf32, #tpu.memory_space<vmem>>, vector<1x32xf32>
    %4 = vector.broadcast %3 : vector<1x32xf32> to vector<16x32xf32>
    %5 = arith.addf %2, %4 : vector<16x32xf32>
    %6 = math.tanh %5 : vector<16x32xf32>
    %c0_5 = arith.constant 0 : index
    %c0_6 = arith.constant 0 : index
    %7 = vector.load %arg4[%c0_5, %c0_6] : memref<32x32xf32, #tpu.memory_space<vmem>>, vector<32x32xf32>
    %cst_7 = arith.constant dense<0.000000e+00> : vector<16x32xf32>
    %8 = tpu.matmul %6, %7, %cst_7 {dimension_numbers = #tpu.dot_dimension_numbers<[1], [0], [0], [1], [0, 0, 1, 1], [], []>} : vector<16x32xf32>, vector<32x32xf32>, vector<16x32xf32> -> vector<16x32xf32>
    %c0_8 = arith.constant 0 : index
    %c0_9 = arith.constant 0 : index
    %9 = vector.load %arg5[%c0_8, %c0_9] : memref<1x32xf32, #tpu.memory_space<vmem>>, vector<1x32xf32>
    %10 = vector.broadcast %9 : vector<1x32xf32> to vector<16x32xf32>
    %11 = arith.addf %8, %10 : vector<16x32xf32>
    %12 = math.tanh %11 : vector<16x32xf32>
    %c0_10 = arith.constant 0 : index
    %c0_11 = arith.constant 0 : index
    %13 = vector.load %arg6[%c0_10, %c0_11] : memref<32x8xf32, #tpu.memory_space<vmem>>, vector<32x8xf32>
    %cst_12 = arith.constant dense<0.000000e+00> : vector<16x8xf32>
    %14 = tpu.matmul %12, %13, %cst_12 {dimension_numbers = #tpu.dot_dimension_numbers<[1], [0], [0], [1], [0, 0, 1, 1], [], []>} : vector<16x32xf32>, vector<32x8xf32>, vector<16x8xf32> -> vector<16x8xf32>
    %c0_13 = arith.constant 0 : index
    %c0_14 = arith.constant 0 : index
    %15 = vector.load %arg7[%c0_13, %c0_14] : memref<1x8xf32, #tpu.memory_space<vmem>>, vector<1x8xf32>
    %16 = vector.broadcast %15 : vector<1x8xf32> to vector<16x8xf32>
    %17 = arith.addf %14, %16 : vector<16x8xf32>
    %c0_15 = arith.constant 0 : index
    %c0_16 = arith.constant 0 : index
    %18 = vector.load %arg8[%c0_15, %c0_16] : memref<16x8xf32, #tpu.memory_space<vmem>>, vector<16x8xf32>
    tpu.vector_store %arg8[%c0_15, %c0_16], %17 {strides = array<i32>} : memref<16x8xf32, #tpu.memory_space<vmem>>, vector<16x8xf32>,
    return
  }
  func.func @transform_0(%arg0: i32) -> (i32, i32) {
    %c0_i32 = arith.constant 0 : i32
    %c0_i32_0 = arith.constant 0 : i32
    return %arg0, %c0_i32 : i32, i32
  }
  func.func @transform_1(%arg0: i32) -> (i32, i32) {
    %c0_i32 = arith.constant 0 : i32
    %c0_i32_0 = arith.constant 0 : i32
    %c0_i32_1 = arith.constant 0 : i32
    return %c0_i32, %c0_i32_0 : i32, i32
  }
  func.func @transform_2(%arg0: i32) -> (i32, i32) {
    %c0_i32 = arith.constant 0 : i32
    %c0_i32_0 = arith.constant 0 : i32
    %c0_i32_1 = arith.constant 0 : i32
    return %c0_i32, %c0_i32_0 : i32, i32
  }
  func.func @transform_3(%arg0: i32) -> (i32, i32) {
    %c0_i32 = arith.constant 0 : i32
    %c0_i32_0 = arith.constant 0 : i32
    %c0_i32_1 = arith.constant 0 : i32
    return %c0_i32, %c0_i32_0 : i32, i32
  }
  func.func @transform_4(%arg0: i32) -> (i32, i32) {
    %c0_i32 = arith.constant 0 : i32
    %c0_i32_0 = arith.constant 0 : i32
    %c0_i32_1 = arith.constant 0 : i32
    return %c0_i32, %c0_i32_0 : i32, i32
  }
  func.func @transform_5(%arg0: i32) -> (i32, i32) {
    %c0_i32 = arith.constant 0 : i32
    %c0_i32_0 = arith.constant 0 : i32
    %c0_i32_1 = arith.constant 0 : i32
    return %c0_i32, %c0_i32_0 : i32, i32
  }
  func.func @transform_6(%arg0: i32) -> (i32, i32) {
    %c0_i32 = arith.constant 0 : i32
    %c0_i32_0 = arith.constant 0 : i32
    %c0_i32_1 = arith.constant 0 : i32
    return %c0_i32, %c0_i32_0 : i32, i32
  }
  func.func @transform_7(%arg0: i32) -> (i32, i32) {
    %c0_i32 = arith.constant 0 : i32
    %c0_i32_0 = arith.constant 0 : i32
    return %arg0, %c0_i32 : i32, i32
  }
}

</mosaic_0001>

<llo_original>
// kernel: gaussian_mlp_forward.1
$region0: #{gaussian_mlp_forward.1}
  #allocation0 [shape = 'u32[]', space=smem, size = 0x4, offset = 0x4, fixed_abs, tag = 'smem constant byte address 0x4 - core index']
  #allocation1 [shape = 'u32[144,128]{1,0:T(1,128)}', space=vmem, size = 0x12000, scoped, tag = 'internal scratch']
  %s0 = inlined_call_operand.vmem [shape: f32[16,16], index: 0, kind: input, shape index: {}]
  %s1 = inlined_call_operand.vmem [shape: f32[16,32], index: 1, kind: input, shape index: {}]
  %s2 = inlined_call_operand.vmem [shape: f32[1,32], index: 2, kind: input, shape index: {}]
  %s3 = inlined_call_operand.vmem [shape: f32[32,32], index: 3, kind: input, shape index: {}]
  %s4 = inlined_call_operand.vmem [shape: f32[1,32], index: 4, kind: input, shape index: {}]
  %s5 = inlined_call_operand.vmem [shape: f32[32,8], index: 5, kind: input, shape index: {}]
  %s6 = inlined_call_operand.vmem [shape: f32[1,8], index: 6, kind: input, shape index: {}]
  %s7 = inlined_call_operand.vmem [shape: f32[16,8], index: 7, kind: output, shape index: {}]
  %s8 = sld [smem:[#allocation0]]
  $region38: #{gaussian_mlp_forward.1} parent=0
    _
  %s10 = ssub.s32 1, %s8
  %s11 = scalar_select 0, %s10, %s8
  // Predicated region
  $region2: #{gaussian_mlp_forward.1} parent=0 // pred_check
    _
  $region3: #{gaussian_mlp_forward.1} parent=0 // pred_check_branch
    %13 = sbr.rel (0) target = $region5
  $region4: #{gaussian_mlp_forward.1} parent=0 // pred_region
    _
  $region5: #{gaussian_mlp_forward.1} parent=0 // pred_fallthru
    _
  // Predicated region
  $region6: #{gaussian_mlp_forward.1} parent=0 // pred_check
    _
  $region7: #{gaussian_mlp_forward.1} parent=0 // pred_check_branch
    %15 = sbr.rel (0) target = $region9
  $region8: #{gaussian_mlp_forward.1} parent=0 // pred_region
    _
  $region9: #{gaussian_mlp_forward.1} parent=0 // pred_fallthru
    _
  // Predicated region
  $region10: #{gaussian_mlp_forward.1} parent=0 // pred_check
    _
  $region11: #{gaussian_mlp_forward.1} parent=0 // pred_check_branch
    %17 = sbr.rel (0) target = $region13
  $region12: #{gaussian_mlp_forward.1} parent=0 // pred_region
    _
  $region13: #{gaussian_mlp_forward.1} parent=0 // pred_fallthru
    _
  // Predicated region
  $region14: #{gaussian_mlp_forward.1} parent=0 // pred_check
    _
  $region15: #{gaussian_mlp_forward.1} parent=0 // pred_check_branch
    %19 = sbr.rel (0) target = $region17
  $region16: #{gaussian_mlp_forward.1} parent=0 // pred_region
    _
  $region17: #{gaussian_mlp_forward.1} parent=0 // pred_fallthru
    _
  // Predicated region
  $region18: #{gaussian_mlp_forward.1} parent=0 // pred_check
    _
  $region19: #{gaussian_mlp_forward.1} parent=0 // pred_check_branch
    %21 = sbr.rel (0) target = $region21
  $region20: #{gaussian_mlp_forward.1} parent=0 // pred_region
    _
  $region21: #{gaussian_mlp_forward.1} parent=0 // pred_fallthru
    _
  // Predicated region
  $region22: #{gaussian_mlp_forward.1} parent=0 // pred_check
    _
  $region23: #{gaussian_mlp_forward.1} parent=0 // pred_check_branch
    %23 = sbr.rel (0) target = $region25
  $region24: #{gaussian_mlp_forward.1} parent=0 // pred_region
    _
  $region25: #{gaussian_mlp_forward.1} parent=0 // pred_fallthru
    _
  // Predicated region
  $region26: #{gaussian_mlp_forward.1} parent=0 // pred_check
    _
  $region27: #{gaussian_mlp_forward.1} parent=0 // pred_check_branch
    %25 = sbr.rel (0) target = $region29
  $region28: #{gaussian_mlp_forward.1} parent=0 // pred_region
    _
  $region29: #{gaussian_mlp_forward.1} parent=0 // pred_fallthru
    _
  %v26 = vld [vmem:[%s0] sm:$0xff]
  %v27 = vld [vmem:[%s0 + $0x8] sm:$0xff]
  %v28 = vld [vmem:[%s1] sm:$0xff]
  %v29 = vld [vmem:[%s1 + $0x8] sm:$0xff]
  %v30 = vld [vmem:[%s2] sm:$0x1]
  %v32 = vlaneseq
  %v33 = vshrl.u32 %v32, 7
  %v34 = vsub.s32 0, %v33
  %v35 = vrot.slane %v30, %v34
  %vm37 = vcmask 130048
  %v39 = vsel %vm37, %v26, 0
  %v42 = vsel %vm37, %v27, 0
  %44 = vmatprep.subr.mxu0 0.0
  %45 = vmatpush1.msra.mxu0 %v28
  %46 = vmatprep.subr.mxu0 0.0
  %47 = vmatpush1.msra.mxu0 %v29
  %48 = vmatprep.subr.mxu0 0.0
  %49 = vmatpush1.msra.mxu0 0.0
  %50 = vmatprep.subr.mxu0 0.0
  %51 = vmatpush1.msra.mxu0 0.0
  %52 = vmatprep.subr.mxu0 0.0
  %53 = vmatpush1.msra.mxu0 0.0
  %54 = vmatprep.subr.mxu0 0.0
  %55 = vmatpush1.msra.mxu0 0.0
  %56 = vmatprep.subr.mxu0 0.0
  %57 = vmatpush1.msra.mxu0 0.0
  %58 = vmatprep.subr.mxu0 0.0
  %59 = vmatpush1.msra.mxu0 0.0
  %60 = vmatprep.subr.mxu0 0.0
  %61 = vmatpush1.msra.mxu0 0.0
  %62 = vmatprep.subr.mxu0 0.0
  %63 = vmatpush1.msra.mxu0 0.0
  %64 = vmatprep.subr.mxu0 0.0
  %65 = vmatpush1.msra.mxu0 0.0
  %66 = vmatprep.subr.mxu0 0.0
  %67 = vmatpush1.msra.mxu0 0.0
  %68 = vmatprep.subr.mxu0 0.0
  %69 = vmatpush1.msra.mxu0 0.0
  %70 = vmatprep.subr.mxu0 0.0
  %71 = vmatpush1.msra.mxu0 0.0
  %72 = vmatprep.subr.mxu0 0.0
  %73 = vmatpush1.msra.mxu0 0.0
  %74 = vmatprep.subr.mxu0 0.0
  %75 = vmatpush1.msra.mxu0 0.0
  %76 = vmatprep.subr.mxu0 0.0
  %77 = vmatpush1.msra.mxu0 0.0
  %78 = vmatprep.subr.mxu0 0.0
  %79 = vmatpush1.msra.mxu0 0.0
  %80 = vmatprep.subr.mxu0 0.0
  %81 = vmatpush1.msra.mxu0 0.0
  %82 = vmatprep.subr.mxu0 0.0
  %83 = vmatpush1.msra.mxu0 0.0
  %84 = vmatprep.subr.mxu0 0.0
  %85 = vmatpush1.msra.mxu0 0.0
  %86 = vmatprep.subr.mxu0 0.0
  %87 = vmatpush1.msra.mxu0 0.0
  %88 = vmatprep.subr.mxu0 0.0
  %89 = vmatpush1.msra.mxu0 0.0
  %90 = vmatprep.subr.mxu0 0.0
  %91 = vmatpush1.msra.mxu0 0.0
  %92 = vmatprep.subr.mxu0 0.0
  %93 = vmatpush1.msra.mxu0 0.0
  %94 = vmatprep.subr.mxu0 0.0
  %95 = vmatpush1.msra.mxu0 0.0
  %96 = vmatprep.subr.mxu0 0.0
  %97 = vmatpush1.msra.mxu0 0.0
  %98 = vmatprep.subr.mxu0 0.0
  %99 = vmatpush1.msra.mxu0 0.0
  %100 = vmatprep.subr.mxu0 0.0
  %101 = vmatpush1.msra.mxu0 0.0
  %102 = vmatprep.subr.mxu0 0.0
  %103 = vmatpush1.msra.mxu0 0.0
  %104 = vmatprep.subr.mxu0 0.0
  %105 = vmatpush1.msra.mxu0 0.0
  %106 = vmatprep.subr.mxu0 0.0
  %107 = vmatpush1.msra.mxu0 0.0
  %108 = vmatprep.mubr.f32.mxu0 0.0
  %109 = vmatmul.mubr.f32.gmra.mrb[0].mxu0 %v39
  %v110 = vpop.f32.mrb[0].mxu0
  %v111 = vadd.f32 %v35, %v110
  %v112 = vpop.f32.mrb[0].mxu0
  %113 = vmatprep.mubr.f32.mxu0 0.0
  %114 = vmatmul.mubr.f32.gmra.mrb[0].mxu0 %v42
  %v115 = vpop.f32.mrb[0].mxu0
  %v116 = vadd.f32 %v35, %v115
  %v117 = vpop.f32.mrb[0].mxu0
  %118 = vdwg.mxu0
  %v119 = vtanh.pop %v111
  %v120 = vtanh.pop %v116
  %v121 = vld [vmem:[%s3] sm:$0xff]
  %v122 = vld [vmem:[%s3 + $0x8] sm:$0xff]
  %v123 = vld [vmem:[%s3 + $0x10] sm:$0xff]
  %v124 = vld [vmem:[%s3 + $0x18] sm:$0xff]
  %v125 = vld [vmem:[%s4] sm:$0x1]
  %v127 = vlaneseq
  %v128 = vshrl.u32 %v127, 7
  %v129 = vsub.s32 0, %v128
  %v130 = vrot.slane %v125, %v129
  %vm132 = vcmask 261120
  %v134 = vsel %vm132, %v119, 0
  %v137 = vsel %vm132, %v120, 0
  %139 = vmatprep.subr.mxu0 0.0
  %140 = vmatpush1.msra.mxu0 %v121
  %141 = vmatprep.subr.mxu0 0.0
  %142 = vmatpush1.msra.mxu0 %v122
  %143 = vmatprep.subr.mxu0 0.0
  %144 = vmatpush1.msra.mxu0 %v123
  %145 = vmatprep.subr.mxu0 0.0
  %146 = vmatpush1.msra.mxu0 %v124
  %147 = vmatprep.subr.mxu0 0.0
  %148 = vmatpush1.msra.mxu0 0.0
  %149 = vmatprep.subr.mxu0 0.0
  %150 = vmatpush1.msra.mxu0 0.0
  %151 = vmatprep.subr.mxu0 0.0
  %152 = vmatpush1.msra.mxu0 0.0
  %153 = vmatprep.subr.mxu0 0.0
  %154 = vmatpush1.msra.mxu0 0.0
  %155 = vmatprep.subr.mxu0 0.0
  %156 = vmatpush1.msra.mxu0 0.0
  %157 = vmatprep.subr.mxu0 0.0
  %158 = vmatpush1.msra.mxu0 0.0
  %159 = vmatprep.subr.mxu0 0.0
  %160 = vmatpush1.msra.mxu0 0.0
  %161 = vmatprep.subr.mxu0 0.0
  %162 = vmatpush1.msra.mxu0 0.0
  %163 = vmatprep.subr.mxu0 0.0
  %164 = vmatpush1.msra.mxu0 0.0
  %165 = vmatprep.subr.mxu0 0.0
  %166 = vmatpush1.msra.mxu0 0.0
  %167 = vmatprep.subr.mxu0 0.0
  %168 = vmatpush1.msra.mxu0 0.0
  %169 = vmatprep.subr.mxu0 0.0
  %170 = vmatpush1.msra.mxu0 0.0
  %171 = vmatprep.subr.mxu0 0.0
  %172 = vmatpush1.msra.mxu0 0.0
  %173 = vmatprep.subr.mxu0 0.0
  %174 = vmatpush1.msra.mxu0 0.0
  %175 = vmatprep.subr.mxu0 0.0
  %176 = vmatpush1.msra.mxu0 0.0
  %177 = vmatprep.subr.mxu0 0.0
  %178 = vmatpush1.msra.mxu0 0.0
  %179 = vmatprep.subr.mxu0 0.0
  %180 = vmatpush1.msra.mxu0 0.0
  %181 = vmatprep.subr.mxu0 0.0
  %182 = vmatpush1.msra.mxu0 0.0
  %183 = vmatprep.subr.mxu0 0.0
  %184 = vmatpush1.msra.mxu0 0.0
  %185 = vmatprep.subr.mxu0 0.0
  %186 = vmatpush1.msra.mxu0 0.0
  %187 = vmatprep.subr.mxu0 0.0
  %188 = vmatpush1.msra.mxu0 0.0
  %189 = vmatprep.subr.mxu0 0.0
  %190 = vmatpush1.msra.mxu0 0.0
  %191 = vmatprep.subr.mxu0 0.0
  %192 = vmatpush1.msra.mxu0 0.0
  %193 = vmatprep.subr.mxu0 0.0
  %194 = vmatpush1.msra.mxu0 0.0
  %195 = vmatprep.subr.mxu0 0.0
  %196 = vmatpush1.msra.mxu0 0.0
  %197 = vmatprep.subr.mxu0 0.0
  %198 = vmatpush1.msra.mxu0 0.0
  %199 = vmatprep.subr.mxu0 0.0
  %200 = vmatpush1.msra.mxu0 0.0
  %201 = vmatprep.subr.mxu0 0.0
  %202 = vmatpush1.msra.mxu0 0.0
  %203 = vmatprep.mubr.f32.mxu0 0.0
  %204 = vmatmul.mubr.f32.gmra.mrb[0].mxu0 %v134
  %v205 = vpop.f32.mrb[0].mxu0
  %v206 = vadd.f32 %v130, %v205
  %v207 = vpop.f32.mrb[0].mxu0
  %208 = vmatprep.mubr.f32.mxu0 0.0
  %209 = vmatmul.mubr.f32.gmra.mrb[0].mxu0 %v137
  %v210 = vpop.f32.mrb[0].mxu0
  %v211 = vadd.f32 %v130, %v210
  %v212 = vpop.f32.mrb[0].mxu0
  %213 = vdwg.mxu0
  %v214 = vtanh.pop %v206
  %v215 = vtanh.pop %v211
  %v216 = vld [vmem:[%s5] sm:$0xff]
  %v217 = vld [vmem:[%s5 + $0x8] sm:$0xff]
  %v218 = vld [vmem:[%s5 + $0x10] sm:$0xff]
  %v219 = vld [vmem:[%s5 + $0x18] sm:$0xff]
  %v220 = vld [vmem:[%s6] sm:$0x1]
  %v222 = vlaneseq
  %v223 = vshrl.u32 %v222, 7
  %v224 = vsub.s32 0, %v223
  %v225 = vrot.slane %v220, %v224
  %v228 = vsel %vm132, %v214, 0
  %v231 = vsel %vm132, %v215, 0
  %233 = vmatprep.subr.mxu0 0.0
  %234 = vmatpush1.msra.mxu0 %v216
  %235 = vmatprep.subr.mxu0 0.0
  %236 = vmatpush1.msra.mxu0 %v217
  %237 = vmatprep.subr.mxu0 0.0
  %238 = vmatpush1.msra.mxu0 %v218
  %239 = vmatprep.subr.mxu0 0.0
  %240 = vmatpush1.msra.mxu0 %v219
  %241 = vmatprep.subr.mxu0 0.0
  %242 = vmatpush1.msra.mxu0 0.0
  %243 = vmatprep.subr.mxu0 0.0
  %244 = vmatpush1.msra.mxu0 0.0
  %245 = vmatprep.subr.mxu0 0.0
  %246 = vmatpush1.msra.mxu0 0.0
  %247 = vmatprep.subr.mxu0 0.0
  %248 = vmatpush1.msra.mxu0 0.0
  %249 = vmatprep.subr.mxu0 0.0
  %250 = vmatpush1.msra.mxu0 0.0
  %251 = vmatprep.subr.mxu0 0.0
  %252 = vmatpush1.msra.mxu0 0.0
  %253 = vmatprep.subr.mxu0 0.0
  %254 = vmatpush1.msra.mxu0 0.0
  %255 = vmatprep.subr.mxu0 0.0
  %256 = vmatpush1.msra.mxu0 0.0
  %257 = vmatprep.subr.mxu0 0.0
  %258 = vmatpush1.msra.mxu0 0.0
  %259 = vmatprep.subr.mxu0 0.0
  %260 = vmatpush1.msra.mxu0 0.0
  %261 = vmatprep.subr.mxu0 0.0
  %262 = vmatpush1.msra.mxu0 0.0
  %263 = vmatprep.subr.mxu0 0.0
  %264 = vmatpush1.msra.mxu0 0.0
  %265 = vmatprep.subr.mxu0 0.0
  %266 = vmatpush1.msra.mxu0 0.0
  %267 = vmatprep.subr.mxu0 0.0
  %268 = vmatpush1.msra.mxu0 0.0
  %269 = vmatprep.subr.mxu0 0.0
  %270 = vmatpush1.msra.mxu0 0.0
  %271 = vmatprep.subr.mxu0 0.0
  %272 = vmatpush1.msra.mxu0 0.0
  %273 = vmatprep.subr.mxu0 0.0
  %274 = vmatpush1.msra.mxu0 0.0
  %275 = vmatprep.subr.mxu0 0.0
  %276 = vmatpush1.msra.mxu0 0.0
  %277 = vmatprep.subr.mxu0 0.0
  %278 = vmatpush1.msra.mxu0 0.0
  %279 = vmatprep.subr.mxu0 0.0
  %280 = vmatpush1.msra.mxu0 0.0
  %281 = vmatprep.subr.mxu0 0.0
  %282 = vmatpush1.msra.mxu0 0.0
  %283 = vmatprep.subr.mxu0 0.0
  %284 = vmatpush1.msra.mxu0 0.0
  %285 = vmatprep.subr.mxu0 0.0
  %286 = vmatpush1.msra.mxu0 0.0
  %287 = vmatprep.subr.mxu0 0.0
  %288 = vmatpush1.msra.mxu0 0.0
  %289 = vmatprep.subr.mxu0 0.0
  %290 = vmatpush1.msra.mxu0 0.0
  %291 = vmatprep.subr.mxu0 0.0
  %292 = vmatpush1.msra.mxu0 0.0
  %293 = vmatprep.subr.mxu0 0.0
  %294 = vmatpush1.msra.mxu0 0.0
  %295 = vmatprep.subr.mxu0 0.0
  %296 = vmatpush1.msra.mxu0 0.0
  %297 = vmatprep.mubr.f32.mxu0 0.0
  %298 = vmatmul.mubr.f32.gmra.mrb[0].mxu0 %v228
  %v299 = vpop.f32.mrb[0].mxu0
  %v300 = vadd.f32 %v225, %v299
  %v301 = vpop.f32.mrb[0].mxu0
  %302 = vmatprep.mubr.f32.mxu0 0.0
  %303 = vmatmul.mubr.f32.gmra.mrb[0].mxu0 %v231
  %v304 = vpop.f32.mrb[0].mxu0
  %v305 = vadd.f32 %v225, %v304
  %v306 = vpop.f32.mrb[0].mxu0
  %307 = vdwg.mxu0
  %vm308 = vcmask 64512
  %309 = vst.msk [vmem:[%s7] sm:$0xff] %vm308, %v300
  %310 = vst.msk [vmem:[%s7 + $0x8] sm:$0xff] %vm308, %v305
  // Predicated region
  $region30: #{gaussian_mlp_forward.1} parent=0 // pred_check
    _
  $region31: #{gaussian_mlp_forward.1} parent=0 // pred_check_branch
    %312 = sbr.rel (0) target = $region33
  $region32: #{gaussian_mlp_forward.1} parent=0 // pred_region
    _
  $region33: #{gaussian_mlp_forward.1} parent=0 // pred_fallthru
    _
  // Predicated region
  $region34: #{gaussian_mlp_forward.1} parent=0 // pred_check
    _
  $region35: #{gaussian_mlp_forward.1} parent=0 // pred_check_branch
    %314 = sbr.rel (0) target = $region37
  $region36: #{gaussian_mlp_forward.1} parent=0 // pred_region
    _
  $region37: #{gaussian_mlp_forward.1} parent=0 // pred_fallthru
    _

</llo_original>
